<compile_context>
chip_gen: v7x
topology: tpu7x:2x2x1
jax: 0.10.0
libtpu: 0.0.40
codegen_flags: <defaults>
</compile_context>

<pallas_src>
import functools

import jax
import jax.numpy as jnp
from jax.experimental import pallas as pl
from jax.experimental.pallas import tpu as pltpu


def _round_up(n, m):
    return ((n + m - 1) // m) * m


def _ffn_kernel(x_ref, w1_ref, b1_ref, w2_ref, b2_ref, gamma_ref, beta_ref,
                o_ref, *, eps):
    # x_ref: (tile_rows, d_model) tile of rows; weights resident in VMEM.
    x = x_ref[...].astype(jnp.float32)

    # LayerNorm over d_model (eps=1e-6) in f32, with affine params folded
    # into a single scale/shift (gamma * rsqrt(var+eps), beta).
    mean = jnp.mean(x, axis=-1, keepdims=True)
    centered = x - mean
    var = jnp.mean(centered * centered, axis=-1, keepdims=True)
    inv = jax.lax.rsqrt(var + eps)
    xn = centered * (inv * gamma_ref[...]) + beta_ref[...]

    # w_1 matmul + bias + ReLU.  bf16 operands on the MXU, f32 accumulation.
    # (dropout_1 == inference identity)
    h = jnp.dot(xn.astype(jnp.bfloat16), w1_ref[...],
                preferred_element_type=jnp.float32)
    h = jnp.maximum(h + b1_ref[...], 0.0)

    # w_2 matmul + bias.  (dropout_2 == inference identity)
    y = jnp.dot(h.astype(jnp.bfloat16), w2_ref[...],
                preferred_element_type=jnp.float32)
    y = y + b2_ref[...]

    # Residual with the ORIGINAL (pre-LayerNorm) input, in f32.
    o_ref[...] = (y + x).astype(o_ref.dtype)


def _build_ffn_call(M, d_model, d_ff, out_dtype, tile_rows, eps,
                    single_buffer_weights, vmem_limit_bytes, cost):
    def const_spec(shape):
        idx = lambda i: (0,) * len(shape)
        if single_buffer_weights:
            # Constant index_map => block is DMA'd once; one buffer suffices.
            return pl.BlockSpec(shape, idx, pipeline_mode=pl.Buffered(1))
        return pl.BlockSpec(shape, idx)

    return pl.pallas_call(
        functools.partial(_ffn_kernel, eps=eps),
        out_shape=jax.ShapeDtypeStruct((M, d_model), out_dtype),
        grid_spec=pltpu.PrefetchScalarGridSpec(
            num_scalar_prefetch=0,
            grid=(M // tile_rows,),
            in_specs=[
                pl.BlockSpec((tile_rows, d_model), lambda i: (i, 0)),  # x tile
                const_spec((d_model, d_ff)),     # w1 (bf16)
                const_spec((1, d_ff)),           # b1 (f32)
                const_spec((d_ff, d_model)),     # w2 (bf16)
                const_spec((1, d_model)),        # b2 (f32)
                const_spec((1, d_model)),        # gamma (f32)
                const_spec((1, d_model)),        # beta (f32)
            ],
            out_specs=pl.BlockSpec((tile_rows, d_model), lambda i: (i, 0)),
        ),
        compiler_params=pltpu.CompilerParams(
            dimension_semantics=("parallel",),   # row axis -> megacore shard
            vmem_limit_bytes=vmem_limit_bytes,
        ),
        cost_estimate=cost,
    )


def positionwise_ffn(x, w1, b1, w2, b2, gamma, beta, *, eps=1e-6,
                     tile_rows=256):
    """x: (batch, seq_len, d_model) -> (batch, seq_len, d_model)."""
    B, L, d_model = x.shape
    d_ff = w1.shape[1]
    M = B * L

    # Row tiling: target 256+ rows per grid step (fills the 256x256 MXU and
    # amortizes per-step overhead); clamp for small problems; keep the tile
    # 8-sublane aligned.
    tile_rows = max(8, _round_up(min(tile_rows, _round_up(M, 8)), 8))
    Mp = _round_up(M, tile_rows)

    x2d = x.reshape(M, d_model)
    if Mp != M:
        # Zero-pad rows; padded rows are computed but sliced off the output.
        x2d = jnp.pad(x2d, ((0, Mp - M), (0, 0)))

    # bf16 weights: 2x MXU rate, half the resident weight VMEM (keeps full
    # d_ff resident even inside v7x's 64 MiB/TC for production sizes).
    w1_bf = w1.astype(jnp.bfloat16)
    w2_bf = w2.astype(jnp.bfloat16)
    b1_2d = b1.reshape(1, d_ff).astype(jnp.float32)
    b2_2d = b2.reshape(1, d_model).astype(jnp.float32)
    g_2d = gamma.reshape(1, d_model).astype(jnp.float32)
    beta_2d = beta.reshape(1, d_model).astype(jnp.float32)

    # VMEM budget (conservative: assume weights get double-buffered anyway).
    in_bytes = x2d.dtype.itemsize
    out_bytes = jnp.dtype(x.dtype).itemsize
    w_bytes = 2 * (d_model * d_ff + d_ff * d_model)              # bf16 weights
    working = (2 * tile_rows * d_model * in_bytes                # x (dbl buf)
               + 2 * tile_rows * d_model * out_bytes             # out (dbl buf)
               + 2 * w_bytes                                     # weights
               + 4 * tile_rows * d_ff + 2 * tile_rows * d_ff     # h f32 + bf16
               + 6 * tile_rows * d_model)                        # xn f32 + bf16
    vmem_limit = int(min(max(working + (8 << 20), 32 << 20), 128 << 20))

    cost = pl.CostEstimate(
        flops=4 * M * d_model * d_ff,
        transcendentals=0,
        bytes_accessed=(M * d_model * (in_bytes + out_bytes) + w_bytes
                        + 4 * (d_ff + 3 * d_model)),
    )

    args = (x2d, w1_bf, b1_2d, w2_bf, b2_2d, g_2d, beta_2d)
    try:
        call = _build_ffn_call(Mp, d_model, d_ff, x.dtype, tile_rows, eps,
                               True, vmem_limit, cost)
        out2d = call(*args)
    except Exception:
        # Fallback if single-buffered (pl.Buffered(1)) constant blocks are
        # rejected by this JAX/Mosaic version: default double buffering.
        call = _build_ffn_call(Mp, d_model, d_ff, x.dtype, tile_rows, eps,
                               False, vmem_limit, cost)
        out2d = call(*args)

    return out2d[:M].reshape(B, L, d_model)


def _reference_f32(x, w1, b1, w2, b2, gamma, beta, eps=1e-6):
    xf = x.astype(jnp.float32)
    mu = jnp.mean(xf, axis=-1, keepdims=True)
    var = jnp.mean((xf - mu) ** 2, axis=-1, keepdims=True)
    xn = (xf - mu) * jax.lax.rsqrt(var + eps) * gamma + beta
    h = jnp.maximum(xn @ w1 + b1, 0.0)
    y = h @ w2 + b2
    return (y + xf).astype(x.dtype)


def _reference_bf16(x, w1, b1, w2, b2, gamma, beta, eps=1e-6):
    # Mirrors the kernel numerics (bf16 MXU operands, f32 accumulation).
    xf = x.astype(jnp.float32)
    mu = jnp.mean(xf, axis=-1, keepdims=True)
    var = jnp.mean((xf - mu) ** 2, axis=-1, keepdims=True)
    xn = (xf - mu) * jax.lax.rsqrt(var + eps) * gamma + beta
    h = jnp.dot(xn.astype(jnp.bfloat16), w1.astype(jnp.bfloat16),
                preferred_element_type=jnp.float32) + b1
    h = jnp.maximum(h, 0.0)
    y = jnp.dot(h.astype(jnp.bfloat16), w2.astype(jnp.bfloat16),
                preferred_element_type=jnp.float32) + b2
    return (y + xf).astype(x.dtype)


if __name__ == "__main__":
    d_model, d_ff = 128, 256
    batch, seq = 2, 8

    key = jax.random.PRNGKey(0)
    kx, kw1, kb1, kw2, kb2 = jax.random.split(key, 5)

    x = jax.random.normal(kx, (batch, seq, d_model), dtype=jnp.float32)

    # Deterministic synthetic parameters (Linear weights stored as (in, out)).
    w1 = jax.random.normal(kw1, (d_model, d_ff), dtype=jnp.float32) * 0.02
    b1 = jax.random.normal(kb1, (d_ff,), dtype=jnp.float32) * 0.02
    w2 = jax.random.normal(kw2, (d_ff, d_model), dtype=jnp.float32) * 0.02
    b2 = jax.random.normal(kb2, (d_model,), dtype=jnp.float32) * 0.02
    gamma = jnp.ones((d_model,), dtype=jnp.float32)
    beta = jnp.zeros((d_model,), dtype=jnp.float32)

    out = positionwise_ffn(x, w1, b1, w2, b2, gamma, beta)
    out = jax.block_until_ready(out)
    assert out.shape == (batch, seq, d_model)

    # Tight check against a reference that mirrors the kernel's bf16-matmul
    # numerics, plus a loose sanity check against the pure-f32 module math.
    ref_bf16 = _reference_bf16(x, w1, b1, w2, b2, gamma, beta)
    ref_f32 = _reference_f32(x, w1, b1, w2, b2, gamma, beta)
    assert jnp.allclose(out, ref_bf16, atol=1e-4, rtol=1e-4), \
        "mismatch vs bf16-matmul reference"
    assert jnp.allclose(out, ref_f32, atol=5e-2, rtol=5e-2), \
        "mismatch vs f32 reference"

    print("KERNEL_OK")
</pallas_src>

<mosaic_0001>
module attributes {stable_mosaic.version = 11 : i64} {
  func.func @_ffn_kernel(%arg0: i32, %arg1: memref<16x128xf32, #tpu.memory_space<vmem>>, %arg2: memref<128x256xbf16, #tpu.memory_space<vmem>>, %arg3: memref<1x256xf32, #tpu.memory_space<vmem>>, %arg4: memref<256x128xbf16, #tpu.memory_space<vmem>>, %arg5: memref<1x128xf32, #tpu.memory_space<vmem>>, %arg6: memref<1x128xf32, #tpu.memory_space<vmem>>, %arg7: memref<1x128xf32, #tpu.memory_space<vmem>>, %arg8: memref<16x128xf32, #tpu.memory_space<vmem>>) attributes {dimension_semantics = [#tpu.dimension_semantics<parallel>], iteration_bounds = array<i64: 1>, scalar_prefetch = 0 : i64, scratch_operands = 0 : i64, tpu.core_type = #tpu.core_type<tc>, window_params = [{transform_indices = @transform_0, window_bounds = array<i64: 16, 128>}, {pipeline_mode = #tpu.pipeline_mode<synchronous>, transform_indices = @transform_1, window_bounds = array<i64: 128, 256>}, {pipeline_mode = #tpu.pipeline_mode<synchronous>, transform_indices = @transform_2, window_bounds = array<i64: 1, 256>}, {pipeline_mode = #tpu.pipeline_mode<synchronous>, transform_indices = @transform_3, window_bounds = array<i64: 256, 128>}, {pipeline_mode = #tpu.pipeline_mode<synchronous>, transform_indices = @transform_4, window_bounds = array<i64: 1, 128>}, {pipeline_mode = #tpu.pipeline_mode<synchronous>, transform_indices = @transform_5, window_bounds = array<i64: 1, 128>}, {pipeline_mode = #tpu.pipeline_mode<synchronous>, transform_indices = @transform_6, window_bounds = array<i64: 1, 128>}, {transform_indices = @transform_7, window_bounds = array<i64: 16, 128>}]} {
    %c0 = arith.constant 0 : index
    %c0_0 = arith.constant 0 : index
    %0 = vector.load %arg1[%c0, %c0_0] : memref<16x128xf32, #tpu.memory_space<vmem>>, vector<16x128xf32>
    %cst = arith.constant dense<0.000000e+00> : vector<16xf32>
    %1 = vector.multi_reduction <add>, %0, %cst [1] : vector<16x128xf32> to vector<16xf32>
    %2 = vector.shape_cast %1 : vector<16xf32> to vector<16x1xf32>
    %cst_1 = arith.constant 1.280000e+02 : f32
    %3 = vector.broadcast %cst_1 : f32 to vector<16x1xf32>
    %4 = arith.divf %2, %3 : vector<16x1xf32>
    %5 = vector.broadcast %4 : vector<16x1xf32> to vector<16x128xf32>
    %6 = arith.subf %0, %5 : vector<16x128xf32>
    %7 = arith.mulf %6, %6 : vector<16x128xf32>
    %cst_2 = arith.constant dense<0.000000e+00> : vector<16xf32>
    %8 = vector.multi_reduction <add>, %7, %cst_2 [1] : vector<16x128xf32> to vector<16xf32>
    %9 = vector.shape_cast %8 : vector<16xf32> to vector<16x1xf32>
    %cst_3 = arith.constant 1.280000e+02 : f32
    %10 = vector.broadcast %cst_3 : f32 to vector<16x1xf32>
    %11 = arith.divf %9, %10 : vector<16x1xf32>
    %cst_4 = arith.constant 9.99999997E-7 : f32
    %12 = vector.broadcast %cst_4 : f32 to vector<16x1xf32>
    %13 = arith.addf %11, %12 : vector<16x1xf32>
    %14 = math.rsqrt %13 : vector<16x1xf32>
    %c0_5 = arith.constant 0 : index
    %c0_6 = arith.constant 0 : index
    %15 = vector.load %arg6[%c0_5, %c0_6] : memref<1x128xf32, #tpu.memory_space<vmem>>, vector<1x128xf32>
    %16 = vector.broadcast %14 : vector<16x1xf32> to vector<16x128xf32>
    %17 = vector.broadcast %15 : vector<1x128xf32> to vector<16x128xf32>
    %18 = arith.mulf %16, %17 : vector<16x128xf32>
    %19 = arith.mulf %6, %18 : vector<16x128xf32>
    %c0_7 = arith.constant 0 : index
    %c0_8 = arith.constant 0 : index
    %20 = vector.load %arg7[%c0_7, %c0_8] : memref<1x128xf32, #tpu.memory_space<vmem>>, vector<1x128xf32>
    %21 = vector.broadcast %20 : vector<1x128xf32> to vector<16x128xf32>
    %22 = arith.addf %19, %21 : vector<16x128xf32>
    %23 = arith.truncf %22 : vector<16x128xf32> to vector<16x128xbf16>
    %c0_9 = arith.constant 0 : index
    %c0_10 = arith.constant 0 : index
    %24 = vector.load %arg2[%c0_9, %c0_10] : memref<128x256xbf16, #tpu.memory_space<vmem>>, vector<128x256xbf16>
    %cst_11 = arith.constant dense<0.000000e+00> : vector<16x256xf32>
    %25 = tpu.matmul %23, %24, %cst_11 {dimension_numbers = #tpu.dot_dimension_numbers<[1], [0], [0], [1], [0, 0, 1, 1], [], []>} : vector<16x128xbf16>, vector<128x256xbf16>, vector<16x256xf32> -> vector<16x256xf32>
    %c0_12 = arith.constant 0 : index
    %c0_13 = arith.constant 0 : index
    %26 = vector.load %arg3[%c0_12, %c0_13] : memref<1x256xf32, #tpu.memory_space<vmem>>, vector<1x256xf32>
    %27 = vector.broadcast %26 : vector<1x256xf32> to vector<16x256xf32>
    %28 = arith.addf %25, %27 : vector<16x256xf32>
    %cst_14 = arith.constant 0.000000e+00 : f32
    %29 = vector.broadcast %cst_14 : f32 to vector<16x256xf32>
    %30 = arith.maximumf %28, %29 : vector<16x256xf32>
    %31 = arith.truncf %30 : vector<16x256xf32> to vector<16x256xbf16>
    %c0_15 = arith.constant 0 : index
    %c0_16 = arith.constant 0 : index
    %32 = vector.load %arg4[%c0_15, %c0_16] : memref<256x128xbf16, #tpu.memory_space<vmem>>, vector<256x128xbf16>
    %cst_17 = arith.constant dense<0.000000e+00> : vector<16x128xf32>
    %33 = tpu.matmul %31, %32, %cst_17 {dimension_numbers = #tpu.dot_dimension_numbers<[1], [0], [0], [1], [0, 0, 1, 1], [], []>} : vector<16x256xbf16>, vector<256x128xbf16>, vector<16x128xf32> -> vector<16x128xf32>
    %c0_18 = arith.constant 0 : index
    %c0_19 = arith.constant 0 : index
    %34 = vector.load %arg5[%c0_18, %c0_19] : memref<1x128xf32, #tpu.memory_space<vmem>>, vector<1x128xf32>
    %35 = vector.broadcast %34 : vector<1x128xf32> to vector<16x128xf32>
    %36 = arith.addf %33, %35 : vector<16x128xf32>
    %37 = arith.addf %36, %0 : vector<16x128xf32>
    %c0_20 = arith.constant 0 : index
    %c0_21 = arith.constant 0 : index
    %38 = vector.load %arg8[%c0_20, %c0_21] : memref<16x128xf32, #tpu.memory_space<vmem>>, vector<16x128xf32>
    tpu.vector_store %arg8[%c0_20, %c0_21], %37 {strides = array<i32>} : memref<16x128xf32, #tpu.memory_space<vmem>>, vector<16x128xf32>,
    return
  }
  func.func @transform_0(%arg0: i32) -> (i32, i32) {
    %c0_i32 = arith.constant 0 : i32
    %c0_i32_0 = arith.constant 0 : i32
    return %arg0, %c0_i32 : i32, i32
  }
  func.func @transform_1(%arg0: i32) -> (i32, i32) {
    %c0_i32 = arith.constant 0 : i32
    %c0_i32_0 = arith.constant 0 : i32
    %c0_i32_1 = arith.constant 0 : i32
    return %c0_i32, %c0_i32_0 : i32, i32
  }
  func.func @transform_2(%arg0: i32) -> (i32, i32) {
    %c0_i32 = arith.constant 0 : i32
    %c0_i32_0 = arith.constant 0 : i32
    %c0_i32_1 = arith.constant 0 : i32
    return %c0_i32, %c0_i32_0 : i32, i32
  }
  func.func @transform_3(%arg0: i32) -> (i32, i32) {
    %c0_i32 = arith.constant 0 : i32
    %c0_i32_0 = arith.constant 0 : i32
    %c0_i32_1 = arith.constant 0 : i32
    return %c0_i32, %c0_i32_0 : i32, i32
  }
  func.func @transform_4(%arg0: i32) -> (i32, i32) {
    %c0_i32 = arith.constant 0 : i32
    %c0_i32_0 = arith.constant 0 : i32
    %c0_i32_1 = arith.constant 0 : i32
    return %c0_i32, %c0_i32_0 : i32, i32
  }
  func.func @transform_5(%arg0: i32) -> (i32, i32) {
    %c0_i32 = arith.constant 0 : i32
    %c0_i32_0 = arith.constant 0 : i32
    %c0_i32_1 = arith.constant 0 : i32
    return %c0_i32, %c0_i32_0 : i32, i32
  }
  func.func @transform_6(%arg0: i32) -> (i32, i32) {
    %c0_i32 = arith.constant 0 : i32
    %c0_i32_0 = arith.constant 0 : i32
    %c0_i32_1 = arith.constant 0 : i32
    return %c0_i32, %c0_i32_0 : i32, i32
  }
  func.func @transform_7(%arg0: i32) -> (i32, i32) {
    %c0_i32 = arith.constant 0 : i32
    %c0_i32_0 = arith.constant 0 : i32
    return %arg0, %c0_i32 : i32, i32
  }
}

module attributes {stable_mosaic.version = 11 : i64} {
  func.func @_ffn_kernel(%arg0: i32, %arg1: memref<16x128xf32, #tpu.memory_space<vmem>>, %arg2: memref<128x256xbf16, #tpu.memory_space<vmem>>, %arg3: memref<1x256xf32, #tpu.memory_space<vmem>>, %arg4: memref<256x128xbf16, #tpu.memory_space<vmem>>, %arg5: memref<1x128xf32, #tpu.memory_space<vmem>>, %arg6: memref<1x128xf32, #tpu.memory_space<vmem>>, %arg7: memref<1x128xf32, #tpu.memory_space<vmem>>, %arg8: memref<16x128xf32, #tpu.memory_space<vmem>>) attributes {dimension_semantics = [#tpu.dimension_semantics<parallel>], iteration_bounds = array<i64: 1>, scalar_prefetch = 0 : i64, scratch_operands = 0 : i64, tpu.core_type = #tpu.core_type<tc>, window_params = [{transform_indices = @transform_0, window_bounds = array<i64: 16, 128>}, {pipeline_mode = #tpu.pipeline_mode<synchronous>, transform_indices = @transform_1, window_bounds = array<i64: 128, 256>}, {pipeline_mode = #tpu.pipeline_mode<synchronous>, transform_indices = @transform_2, window_bounds = array<i64: 1, 256>}, {pipeline_mode = #tpu.pipeline_mode<synchronous>, transform_indices = @transform_3, window_bounds = array<i64: 256, 128>}, {pipeline_mode = #tpu.pipeline_mode<synchronous>, transform_indices = @transform_4, window_bounds = array<i64: 1, 128>}, {pipeline_mode = #tpu.pipeline_mode<synchronous>, transform_indices = @transform_5, window_bounds = array<i64: 1, 128>}, {pipeline_mode = #tpu.pipeline_mode<synchronous>, transform_indices = @transform_6, window_bounds = array<i64: 1, 128>}, {transform_indices = @transform_7, window_bounds = array<i64: 16, 128>}]} {
    %c0 = arith.constant 0 : index
    %c0_0 = arith.constant 0 : index
    %0 = vector.load %arg1[%c0, %c0_0] : memref<16x128xf32, #tpu.memory_space<vmem>>, vector<16x128xf32>
    %cst = arith.constant dense<0.000000e+00> : vector<16xf32>
    %1 = vector.multi_reduction <add>, %0, %cst [1] : vector<16x128xf32> to vector<16xf32>
    %2 = vector.shape_cast %1 : vector<16xf32> to vector<16x1xf32>
    %cst_1 = arith.constant 1.280000e+02 : f32
    %3 = vector.broadcast %cst_1 : f32 to vector<16x1xf32>
    %4 = arith.divf %2, %3 : vector<16x1xf32>
    %5 = vector.broadcast %4 : vector<16x1xf32> to vector<16x128xf32>
    %6 = arith.subf %0, %5 : vector<16x128xf32>
    %7 = arith.mulf %6, %6 : vector<16x128xf32>
    %cst_2 = arith.constant dense<0.000000e+00> : vector<16xf32>
    %8 = vector.multi_reduction <add>, %7, %cst_2 [1] : vector<16x128xf32> to vector<16xf32>
    %9 = vector.shape_cast %8 : vector<16xf32> to vector<16x1xf32>
    %cst_3 = arith.constant 1.280000e+02 : f32
    %10 = vector.broadcast %cst_3 : f32 to vector<16x1xf32>
    %11 = arith.divf %9, %10 : vector<16x1xf32>
    %cst_4 = arith.constant 9.99999997E-7 : f32
    %12 = vector.broadcast %cst_4 : f32 to vector<16x1xf32>
    %13 = arith.addf %11, %12 : vector<16x1xf32>
    %14 = math.rsqrt %13 : vector<16x1xf32>
    %c0_5 = arith.constant 0 : index
    %c0_6 = arith.constant 0 : index
    %15 = vector.load %arg6[%c0_5, %c0_6] : memref<1x128xf32, #tpu.memory_space<vmem>>, vector<1x128xf32>
    %16 = vector.broadcast %14 : vector<16x1xf32> to vector<16x128xf32>
    %17 = vector.broadcast %15 : vector<1x128xf32> to vector<16x128xf32>
    %18 = arith.mulf %16, %17 : vector<16x128xf32>
    %19 = arith.mulf %6, %18 : vector<16x128xf32>
    %c0_7 = arith.constant 0 : index
    %c0_8 = arith.constant 0 : index
    %20 = vector.load %arg7[%c0_7, %c0_8] : memref<1x128xf32, #tpu.memory_space<vmem>>, vector<1x128xf32>
    %21 = vector.broadcast %20 : vector<1x128xf32> to vector<16x128xf32>
    %22 = arith.addf %19, %21 : vector<16x128xf32>
    %23 = arith.truncf %22 : vector<16x128xf32> to vector<16x128xbf16>
    %c0_9 = arith.constant 0 : index
    %c0_10 = arith.constant 0 : index
    %24 = vector.load %arg2[%c0_9, %c0_10] : memref<128x256xbf16, #tpu.memory_space<vmem>>, vector<128x256xbf16>
    %cst_11 = arith.constant dense<0.000000e+00> : vector<16x256xf32>
    %25 = tpu.matmul %23, %24, %cst_11 {dimension_numbers = #tpu.dot_dimension_numbers<[1], [0], [0], [1], [0, 0, 1, 1], [], []>} : vector<16x128xbf16>, vector<128x256xbf16>, vector<16x256xf32> -> vector<16x256xf32>
    %c0_12 = arith.constant 0 : index
    %c0_13 = arith.constant 0 : index
    %26 = vector.load %arg3[%c0_12, %c0_13] : memref<1x256xf32, #tpu.memory_space<vmem>>, vector<1x256xf32>
    %27 = vector.broadcast %26 : vector<1x256xf32> to vector<16x256xf32>
    %28 = arith.addf %25, %27 : vector<16x256xf32>
    %cst_14 = arith.constant 0.000000e+00 : f32
    %29 = vector.broadcast %cst_14 : f32 to vector<16x256xf32>
    %30 = arith.maximumf %28, %29 : vector<16x256xf32>
    %31 = arith.truncf %30 : vector<16x256xf32> to vector<16x256xbf16>
    %c0_15 = arith.constant 0 : index
    %c0_16 = arith.constant 0 : index
    %32 = vector.load %arg4[%c0_15, %c0_16] : memref<256x128xbf16, #tpu.memory_space<vmem>>, vector<256x128xbf16>
    %cst_17 = arith.constant dense<0.000000e+00> : vector<16x128xf32>
    %33 = tpu.matmul %31, %32, %cst_17 {dimension_numbers = #tpu.dot_dimension_numbers<[1], [0], [0], [1], [0, 0, 1, 1], [], []>} : vector<16x256xbf16>, vector<256x128xbf16>, vector<16x128xf32> -> vector<16x128xf32>
    %c0_18 = arith.constant 0 : index
    %c0_19 = arith.constant 0 : index
    %34 = vector.load %arg5[%c0_18, %c0_19] : memref<1x128xf32, #tpu.memory_space<vmem>>, vector<1x128xf32>
    %35 = vector.broadcast %34 : vector<1x128xf32> to vector<16x128xf32>
    %36 = arith.addf %33, %35 : vector<16x128xf32>
    %37 = arith.addf %36, %0 : vector<16x128xf32>
    %c0_20 = arith.constant 0 : index
    %c0_21 = arith.constant 0 : index
    %38 = vector.load %arg8[%c0_20, %c0_21] : memref<16x128xf32, #tpu.memory_space<vmem>>, vector<16x128xf32>
    tpu.vector_store %arg8[%c0_20, %c0_21], %37 {strides = array<i32>} : memref<16x128xf32, #tpu.memory_space<vmem>>, vector<16x128xf32>,
    return
  }
  func.func @transform_0(%arg0: i32) -> (i32, i32) {
    %c0_i32 = arith.constant 0 : i32
    %c0_i32_0 = arith.constant 0 : i32
    return %arg0, %c0_i32 : i32, i32
  }
  func.func @transform_1(%arg0: i32) -> (i32, i32) {
    %c0_i32 = arith.constant 0 : i32
    %c0_i32_0 = arith.constant 0 : i32
    %c0_i32_1 = arith.constant 0 : i32
    return %c0_i32, %c0_i32_0 : i32, i32
  }
  func.func @transform_2(%arg0: i32) -> (i32, i32) {
    %c0_i32 = arith.constant 0 : i32
    %c0_i32_0 = arith.constant 0 : i32
    %c0_i32_1 = arith.constant 0 : i32
    return %c0_i32, %c0_i32_0 : i32, i32
  }
  func.func @transform_3(%arg0: i32) -> (i32, i32) {
    %c0_i32 = arith.constant 0 : i32
    %c0_i32_0 = arith.constant 0 : i32
    %c0_i32_1 = arith.constant 0 : i32
    return %c0_i32, %c0_i32_0 : i32, i32
  }
  func.func @transform_4(%arg0: i32) -> (i32, i32) {
    %c0_i32 = arith.constant 0 : i32
    %c0_i32_0 = arith.constant 0 : i32
    %c0_i32_1 = arith.constant 0 : i32
    return %c0_i32, %c0_i32_0 : i32, i32
  }
  func.func @transform_5(%arg0: i32) -> (i32, i32) {
    %c0_i32 = arith.constant 0 : i32
    %c0_i32_0 = arith.constant 0 : i32
    %c0_i32_1 = arith.constant 0 : i32
    return %c0_i32, %c0_i32_0 : i32, i32
  }
  func.func @transform_6(%arg0: i32) -> (i32, i32) {
    %c0_i32 = arith.constant 0 : i32
    %c0_i32_0 = arith.constant 0 : i32
    %c0_i32_1 = arith.constant 0 : i32
    return %c0_i32, %c0_i32_0 : i32, i32
  }
  func.func @transform_7(%arg0: i32) -> (i32, i32) {
    %c0_i32 = arith.constant 0 : i32
    %c0_i32_0 = arith.constant 0 : i32
    return %arg0, %c0_i32 : i32, i32
  }
}

</mosaic_0001>

<llo_original>
// kernel: tpu_custom_call.1
$region0: #{tpu_custom_call.1}
  #allocation0 [shape = 'u32[]', space=smem, size = 0x4, offset = 0x4, fixed_abs, tag = 'smem constant byte address 0x4 - core index']
  #allocation1 [shape = 'u32[144,128]{1,0:T(1,128)}', space=vmem, size = 0x12000, scoped, tag = 'internal scratch']
  %s0 = inlined_call_operand.hbm [shape: f32[16,128], index: 0, kind: input, shape index: {}]
  %s1 = inlined_call_operand.hbm [shape: bf16[128,256], index: 1, kind: input, shape index: {}]
  %s2 = inlined_call_operand.vmem [shape: f32[1,256], index: 2, kind: input, shape index: {}]
  %s3 = inlined_call_operand.hbm [shape: bf16[256,128], index: 3, kind: input, shape index: {}]
  %s4 = inlined_call_operand.vmem [shape: f32[1,128], index: 4, kind: input, shape index: {}]
  %s5 = inlined_call_operand.vmem [shape: f32[1,128], index: 5, kind: input, shape index: {}]
  %s6 = inlined_call_operand.vmem [shape: f32[1,128], index: 6, kind: input, shape index: {}]
  %s7 = inlined_call_operand.hbm [shape: f32[16,128], index: 7, kind: output, shape index: {}]
  %s8 = sld [smem:[#allocation0]]
  $region50: #{tpu_custom_call.1} parent=0
    _
  %s10 = ssub.s32 1, %s8
  %s11 = scalar_select 0, %s10, %s8
  $region1: #{tpu_custom_call.1} parent=0
    #allocation2 [shape = 'u8[8192]{0}', space=vmem, size = 0x2000, scoped, tag = 'input window, operand 0, single buffered']
    #allocation3 [shape = 's32[1]{0}', space=sflag, size = 0x4, scoped, tag = 'scoped memory for tpu_custom_call.1']
    #allocation4 [shape = 's32[1]{0}', space=sflag, size = 0x4, scoped, tag = 'scoped memory for tpu_custom_call.1']
    #allocation5 [shape = 'u8[65536]{0}', space=vmem, size = 0x10000, scoped, tag = 'input window, operand 1, single buffered']
    #allocation6 [shape = 's32[1]{0}', space=sflag, size = 0x4, scoped, tag = 'scoped memory for tpu_custom_call.1']
    #allocation7 [shape = 'u8[65536]{0}', space=vmem, size = 0x10000, scoped, tag = 'input window, operand 3, single buffered']
    #allocation8 [shape = 'u8[8192]{0}', space=vmem, size = 0x2000, scoped, tag = 'output window, operand 0, single buffered']
    %12 = vsyncpa [#allocation3], 0
    %13 = vsyncpa [#allocation6], 0
    %14 = vsyncpa [#allocation4], 0
    // Predicated region
    $region2: #{tpu_custom_call.1} parent=1 // pred_check
      _
    $region3: #{tpu_custom_call.1} parent=1 // pred_check_branch
      %16 = sbr.rel (0) target = $region5
    $region4: #{tpu_custom_call.1} parent=1 // pred_region
      %s18 = ssub.s32 256, 256
      %19 = vsyncadd [#allocation3], %s18
      %s20 = sshll.u32 [#allocation2], 4
      %s21 = int_to_ptr.vmem [resolvable:$true] %s20
      %26 = dma.hbm_to_vmem [thread:$0]  %s0, 256, %s21, [#allocation3], 128, 128, 8
    $region5: #{tpu_custom_call.1} parent=1 // pred_fallthru
      _
    // Predicated region
    $region6: #{tpu_custom_call.1} parent=1 // pred_check
      _
    $region7: #{tpu_custom_call.1} parent=1 // pred_check_branch
      %28 = sbr.rel (0) target = $region9
    $region8: #{tpu_custom_call.1} parent=1 // pred_region
      %s30 = ssub.s32 2048, 2048
      %31 = vsyncadd [#allocation6], %s30
      %s32 = sshll.u32 [#allocation5], 4
      %s33 = int_to_ptr.vmem [resolvable:$true] %s32
      %38 = dma.hbm_to_vmem [thread:$0]  %s1, 2048, %s33, [#allocation6], 128, 128, 8
    $region9: #{tpu_custom_call.1} parent=1 // pred_fallthru
      _
    // Predicated region
    $region10: #{tpu_custom_call.1} parent=1 // pred_check
      _
    $region11: #{tpu_custom_call.1} parent=1 // pred_check_branch
      %40 = sbr.rel (0) target = $region13
    $region12: #{tpu_custom_call.1} parent=1 // pred_region
      _
    $region13: #{tpu_custom_call.1} parent=1 // pred_fallthru
      _
    // Predicated region
    $region14: #{tpu_custom_call.1} parent=1 // pred_check
      _
    $region15: #{tpu_custom_call.1} parent=1 // pred_check_branch
      %42 = sbr.rel (0) target = $region17
    $region16: #{tpu_custom_call.1} parent=1 // pred_region
      %s44 = ssub.s32 2048, 2048
      %45 = vsyncadd [#allocation6], %s44
      %s46 = sshll.u32 [#allocation7], 4
      %s47 = int_to_ptr.vmem [resolvable:$true] %s46
      %52 = dma.hbm_to_vmem [thread:$0]  %s3, 2048, %s47, [#allocation6], 64, 64, 4
    $region17: #{tpu_custom_call.1} parent=1 // pred_fallthru
      _
    // Predicated region
    $region18: #{tpu_custom_call.1} parent=1 // pred_check
      _
    $region19: #{tpu_custom_call.1} parent=1 // pred_check_branch
      %54 = sbr.rel (0) target = $region21
    $region20: #{tpu_custom_call.1} parent=1 // pred_region
      _
    $region21: #{tpu_custom_call.1} parent=1 // pred_fallthru
      _
    // Predicated region
    $region22: #{tpu_custom_call.1} parent=1 // pred_check
      _
    $region23: #{tpu_custom_call.1} parent=1 // pred_check_branch
      %56 = sbr.rel (0) target = $region25
    $region24: #{tpu_custom_call.1} parent=1 // pred_region
      _
    $region25: #{tpu_custom_call.1} parent=1 // pred_fallthru
      _
    // Predicated region
    $region26: #{tpu_custom_call.1} parent=1 // pred_check
      _
    $region27: #{tpu_custom_call.1} parent=1 // pred_check_branch
      %58 = sbr.rel (0) target = $region29
    $region28: #{tpu_custom_call.1} parent=1 // pred_region
      _
    $region29: #{tpu_custom_call.1} parent=1 // pred_fallthru
      _
    // Predicated region
    $region30: #{tpu_custom_call.1} parent=1 // pred_check
      _
    $region31: #{tpu_custom_call.1} parent=1 // pred_check_branch
      %60 = sbr.rel (0) target = $region33
    $region32: #{tpu_custom_call.1} parent=1 // pred_region
      %61 = dma.done [#allocation3], 256
    $region33: #{tpu_custom_call.1} parent=1 // pred_fallthru
      _
    // Predicated region
    $region34: #{tpu_custom_call.1} parent=1 // pred_check
      _
    $region35: #{tpu_custom_call.1} parent=1 // pred_check_branch
      %63 = sbr.rel (0) target = $region37
    $region36: #{tpu_custom_call.1} parent=1 // pred_region
      %64 = dma.done [#allocation6], 2048
    $region37: #{tpu_custom_call.1} parent=1 // pred_fallthru
      _
    // Predicated region
    $region38: #{tpu_custom_call.1} parent=1 // pred_check
      _
    $region39: #{tpu_custom_call.1} parent=1 // pred_check_branch
      %66 = sbr.rel (0) target = $region41
    $region40: #{tpu_custom_call.1} parent=1 // pred_region
      %67 = dma.done [#allocation6], 2048
    $region41: #{tpu_custom_call.1} parent=1 // pred_fallthru
      _
    %v69 = vld [vmem:[#allocation2] sm:$0xff]
    %v70 = vld [vmem:[#allocation2 + $0x8] sm:$0xff]
    %71 = vadd.xlane.f32.xlu0 %v69
    %v72 = vpop.xlane.xlu0 %71
    %73 = vadd.xlane.f32.xlu0 %v70
    %v74 = vpop.xlane.xlu0 %73
    %v75 = vrcp.pop 128.0
    %v76 = vmul.f32 %v72, %v75
    %v77 = vmul.f32 %v74, %v75
    %v78 = vsub.f32 %v69, %v76
    %v79 = vsub.f32 %v70, %v77
    %v80 = vmul.f32 %v78, %v78
    %v81 = vmul.f32 %v79, %v79
    %82 = vadd.xlane.f32.xlu0 %v80
    %v83 = vpop.xlane.xlu0 %82
    %84 = vadd.xlane.f32.xlu0 %v81
    %v85 = vpop.xlane.xlu0 %84
    %v86 = vmul.f32 %v83, %v75
    %v87 = vmul.f32 %v85, %v75
    %v88 = vadd.f32 %v86, 1e-06
    %v89 = vadd.f32 %v87, 1e-06
    %v90 = vrsqrt.pop %v88
    %v91 = vrsqrt.pop %v89
    %v92 = vld [vmem:[%s5] sm:$0x1]
    %v94 = vlaneseq
    %v95 = vshrl.u32 %v94, 7
    %v96 = vsub.s32 0, %v95
    %v97 = vrot.slane %v92, %v96
    %v99 = vmul.f32 %v90, %v97
    %v100 = vmul.f32 %v91, %v97
    %v101 = vmul.f32 %v78, %v99
    %v102 = vmul.f32 %v79, %v100
    %v103 = vld [vmem:[%s6] sm:$0x1]
    %v105 = vlaneseq
    %v106 = vshrl.u32 %v105, 7
    %v107 = vsub.s32 0, %v106
    %v108 = vrot.slane %v103, %v107
    %v110 = vadd.f32 %v101, %v108
    %v111 = vadd.f32 %v102, %v108
    %v112 = vpack.c.bf16 %v111, %v110
    %v113 = vld [vmem:[#allocation5] sm:$0xff]
    %v114 = vld [vmem:[#allocation5 + $0x8] sm:$0xff]
    %v115 = vld [vmem:[#allocation5 + $0x10] sm:$0xff]
    %v116 = vld [vmem:[#allocation5 + $0x18] sm:$0xff]
    %v117 = vld [vmem:[#allocation5 + $0x20] sm:$0xff]
    %v118 = vld [vmem:[#allocation5 + $0x28] sm:$0xff]
    %v119 = vld [vmem:[#allocation5 + $0x30] sm:$0xff]
    %v120 = vld [vmem:[#allocation5 + $0x38] sm:$0xff]
    %v121 = vld [vmem:[#allocation5 + $0x40] sm:$0xff]
    %v122 = vld [vmem:[#allocation5 + $0x48] sm:$0xff]
    %v123 = vld [vmem:[#allocation5 + $0x50] sm:$0xff]
    %v124 = vld [vmem:[#allocation5 + $0x58] sm:$0xff]
    %v125 = vld [vmem:[#allocation5 + $0x60] sm:$0xff]
    %v126 = vld [vmem:[#allocation5 + $0x68] sm:$0xff]
    %v127 = vld [vmem:[#allocation5 + $0x70] sm:$0xff]
    %v128 = vld [vmem:[#allocation5 + $0x78] sm:$0xff]
    %v129 = vld [vmem:[%s2] sm:$0x3]
    %v131 = vlaneseq
    %v132 = vshrl.u32 %v131, 7
    %v133 = vsub.s32 0, %v132
    %v134 = vrot.slane %v129, %v133
    %v135 = vlaneseq
    %v136 = vshrl.u32 %v135, 7
    %v137 = vsub.s32 1, %v136
    %v138 = vrot.slane %v129, %v137
    %v157 = vunpack.c.l.b16 %v113
    %v158 = vunpack.c.h.b16 %v113
    %v159 = vunpack.c.l.b16 %v114
    %v160 = vunpack.c.h.b16 %v114
    %v161 = vunpack.c.l.b16 %v115
    %v162 = vunpack.c.h.b16 %v115
    %v163 = vunpack.c.l.b16 %v116
    %v164 = vunpack.c.h.b16 %v116
    %v165 = vunpack.c.l.b16 %v117
    %v166 = vunpack.c.h.b16 %v117
    %v167 = vunpack.c.l.b16 %v118
    %v168 = vunpack.c.h.b16 %v118
    %v169 = vunpack.c.l.b16 %v119
    %v170 = vunpack.c.h.b16 %v119
    %v171 = vunpack.c.l.b16 %v120
    %v172 = vunpack.c.h.b16 %v120
    %v173 = vunpack.c.l.b16 %v121
    %v174 = vunpack.c.h.b16 %v121
    %v175 = vunpack.c.l.b16 %v122
    %v176 = vunpack.c.h.b16 %v122
    %v177 = vunpack.c.l.b16 %v123
    %v178 = vunpack.c.h.b16 %v123
    %v179 = vunpack.c.l.b16 %v124
    %v180 = vunpack.c.h.b16 %v124
    %v181 = vunpack.c.l.b16 %v125
    %v182 = vunpack.c.h.b16 %v125
    %v183 = vunpack.c.l.b16 %v126
    %v184 = vunpack.c.h.b16 %v126
    %v185 = vunpack.c.l.b16 %v127
    %v186 = vunpack.c.h.b16 %v127
    %v187 = vunpack.c.l.b16 %v128
    %v188 = vunpack.c.h.b16 %v128
    %v189 = vpack.c.b16 %v159, %v157
    %v190 = vpack.c.b16 %v160, %v158
    %v191 = vpack.c.b16 %v163, %v161
    %v192 = vpack.c.b16 %v164, %v162
    %v193 = vpack.c.b16 %v167, %v165
    %v194 = vpack.c.b16 %v168, %v166
    %v195 = vpack.c.b16 %v171, %v169
    %v196 = vpack.c.b16 %v172, %v170
    %v197 = vpack.c.b16 %v175, %v173
    %v198 = vpack.c.b16 %v176, %v174
    %v199 = vpack.c.b16 %v179, %v177
    %v200 = vpack.c.b16 %v180, %v178
    %v201 = vpack.c.b16 %v183, %v181
    %v202 = vpack.c.b16 %v184, %v182
    %v203 = vpack.c.b16 %v187, %v185
    %v204 = vpack.c.b16 %v188, %v186
    %221 = vmatprep.subr.bf16.mxu0 %v190
    %222 = vmatpush1.bf16.msra.mxu0 %v189
    %223 = vmatprep.subr.bf16.mxu0 %v192
    %224 = vmatpush1.bf16.msra.mxu0 %v191
    %225 = vmatprep.subr.bf16.mxu0 %v194
    %226 = vmatpush1.bf16.msra.mxu0 %v193
    %227 = vmatprep.subr.bf16.mxu0 %v196
    %228 = vmatpush1.bf16.msra.mxu0 %v195
    %229 = vmatprep.subr.bf16.mxu0 %v198
    %230 = vmatpush1.bf16.msra.mxu0 %v197
    %231 = vmatprep.subr.bf16.mxu0 %v200
    %232 = vmatpush1.bf16.msra.mxu0 %v199
    %233 = vmatprep.subr.bf16.mxu0 %v202
    %234 = vmatpush1.bf16.msra.mxu0 %v201
    %235 = vmatprep.subr.bf16.mxu0 %v204
    %236 = vmatpush1.bf16.msra.mxu0 %v203
    %237 = vmatprep.subr.bf16.mxu0 0
    %238 = vmatpush1.bf16.msra.mxu0 0
    %239 = vmatprep.subr.bf16.mxu0 0
    %240 = vmatpush1.bf16.msra.mxu0 0
    %241 = vmatprep.subr.bf16.mxu0 0
    %242 = vmatpush1.bf16.msra.mxu0 0
    %243 = vmatprep.subr.bf16.mxu0 0
    %244 = vmatpush1.bf16.msra.mxu0 0
    %245 = vmatprep.subr.bf16.mxu0 0
    %246 = vmatpush1.bf16.msra.mxu0 0
    %247 = vmatprep.subr.bf16.mxu0 0
    %248 = vmatpush1.bf16.msra.mxu0 0
    %249 = vmatprep.subr.bf16.mxu0 0
    %250 = vmatpush1.bf16.msra.mxu0 0
    %251 = vmatprep.subr.bf16.mxu0 0
    %252 = vmatpush1.bf16.msra.mxu0 0
    %253 = vmatprep.mubr.bf16.mxu0 0
    %254 = vmatmul.mubr.bf16.gmra.mrb[0].mxu0 %v112
    %v255 = vpop.f32.mrb[0].mxu0
    %v256 = vadd.f32 %v134, %v255
    %v257 = vpop.f32.mrb[0].mxu0
    %v258 = vadd.f32 %v138, %v257
    %v259 = vpop.f32.mrb[0].mxu0
    %v260 = vadd.f32 %v134, %v259
    %v261 = vpop.f32.mrb[0].mxu0
    %v262 = vadd.f32 %v138, %v261
    %263 = vdwg.mxu0
    %v264 = vmax.f32 %v256, 0.0
    %v265 = vmax.f32 %v258, 0.0
    %v266 = vmax.f32 %v260, 0.0
    %v267 = vmax.f32 %v262, 0.0
    %v268 = vpack.c.bf16 %v266, %v264
    %v269 = vpack.c.bf16 %v267, %v265
    %v270 = vld [vmem:[#allocation7] sm:$0xf]
    %v271 = vld [vmem:[#allocation7 + $0x4] sm:$0xf]
    %v272 = vld [vmem:[#allocation7 + $0x8] sm:$0xf]
    %v273 = vld [vmem:[#allocation7 + $0xc] sm:$0xf]
    %v274 = vld [vmem:[#allocation7 + $0x10] sm:$0xf]
    %v275 = vld [vmem:[#allocation7 + $0x14] sm:$0xf]
    %v276 = vld [vmem:[#allocation7 + $0x18] sm:$0xf]
    %v277 = vld [vmem:[#allocation7 + $0x1c] sm:$0xf]
    %v278 = vld [vmem:[#allocation7 + $0x20] sm:$0xf]
    %v279 = vld [vmem:[#allocation7 + $0x24] sm:$0xf]
    %v280 = vld [vmem:[#allocation7 + $0x28] sm:$0xf]
    %v281 = vld [vmem:[#allocation7 + $0x2c] sm:$0xf]
    %v282 = vld [vmem:[#allocation7 + $0x30] sm:$0xf]
    %v283 = vld [vmem:[#allocation7 + $0x34] sm:$0xf]
    %v284 = vld [vmem:[#allocation7 + $0x38] sm:$0xf]
    %v285 = vld [vmem:[#allocation7 + $0x3c] sm:$0xf]
    %v286 = vld [vmem:[#allocation7 + $0x40] sm:$0xf]
    %v287 = vld [vmem:[#allocation7 + $0x44] sm:$0xf]
    %v288 = vld [vmem:[#allocation7 + $0x48] sm:$0xf]
    %v289 = vld [vmem:[#allocation7 + $0x4c] sm:$0xf]
    %v290 = vld [vmem:[#allocation7 + $0x50] sm:$0xf]
    %v291 = vld [vmem:[#allocation7 + $0x54] sm:$0xf]
    %v292 = vld [vmem:[#allocation7 + $0x58] sm:$0xf]
    %v293 = vld [vmem:[#allocation7 + $0x5c] sm:$0xf]
    %v294 = vld [vmem:[#allocation7 + $0x60] sm:$0xf]
    %v295 = vld [vmem:[#allocation7 + $0x64] sm:$0xf]
    %v296 = vld [vmem:[#allocation7 + $0x68] sm:$0xf]
    %v297 = vld [vmem:[#allocation7 + $0x6c] sm:$0xf]
    %v298 = vld [vmem:[#allocation7 + $0x70] sm:$0xf]
    %v299 = vld [vmem:[#allocation7 + $0x74] sm:$0xf]
    %v300 = vld [vmem:[#allocation7 + $0x78] sm:$0xf]
    %v301 = vld [vmem:[#allocation7 + $0x7c] sm:$0xf]
    %v302 = vld [vmem:[%s4] sm:$0x1]
    %v304 = vlaneseq
    %v305 = vshrl.u32 %v304, 7
    %v306 = vsub.s32 0, %v305
    %v307 = vrot.slane %v302, %v306
    %v341 = vunpack.c.l.b16 %v270
    %v342 = vunpack.c.l.b16 %v271
    %v343 = vunpack.c.l.b16 %v272
    %v344 = vunpack.c.l.b16 %v273
    %v345 = vunpack.c.l.b16 %v274
    %v346 = vunpack.c.l.b16 %v275
    %v347 = vunpack.c.l.b16 %v276
    %v348 = vunpack.c.l.b16 %v277
    %v349 = vunpack.c.l.b16 %v278
    %v350 = vunpack.c.l.b16 %v279
    %v351 = vunpack.c.l.b16 %v280
    %v352 = vunpack.c.l.b16 %v281
    %v353 = vunpack.c.l.b16 %v282
    %v354 = vunpack.c.l.b16 %v283
    %v355 = vunpack.c.l.b16 %v284
    %v356 = vunpack.c.l.b16 %v285
    %v357 = vunpack.c.l.b16 %v286
    %v358 = vunpack.c.l.b16 %v287
    %v359 = vunpack.c.l.b16 %v288
    %v360 = vunpack.c.l.b16 %v289
    %v361 = vunpack.c.l.b16 %v290
    %v362 = vunpack.c.l.b16 %v291
    %v363 = vunpack.c.l.b16 %v292
    %v364 = vunpack.c.l.b16 %v293
    %v365 = vunpack.c.l.b16 %v294
    %v366 = vunpack.c.l.b16 %v295
    %v367 = vunpack.c.l.b16 %v296
    %v368 = vunpack.c.l.b16 %v297
    %v369 = vunpack.c.l.b16 %v298
    %v370 = vunpack.c.l.b16 %v299
    %v371 = vunpack.c.l.b16 %v300
    %v372 = vunpack.c.l.b16 %v301
    %v373 = vpack.c.b16 %v342, %v341
    %v374 = vpack.c.b16 %v344, %v343
    %v375 = vpack.c.b16 %v346, %v345
    %v376 = vpack.c.b16 %v348, %v347
    %v377 = vpack.c.b16 %v350, %v349
    %v378 = vpack.c.b16 %v352, %v351
    %v379 = vpack.c.b16 %v354, %v353
    %v380 = vpack.c.b16 %v356, %v355
    %v381 = vpack.c.b16 %v358, %v357
    %v382 = vpack.c.b16 %v360, %v359
    %v383 = vpack.c.b16 %v362, %v361
    %v384 = vpack.c.b16 %v364, %v363
    %v385 = vpack.c.b16 %v366, %v365
    %v386 = vpack.c.b16 %v368, %v367
    %v387 = vpack.c.b16 %v370, %v369
    %v388 = vpack.c.b16 %v372, %v371
    %405 = vmatprep.subr.bf16.mxu0 0
    %406 = vmatpush1.bf16.msra.mxu0 %v373
    %407 = vmatprep.subr.bf16.mxu0 0
    %408 = vmatpush1.bf16.msra.mxu0 %v374
    %409 = vmatprep.subr.bf16.mxu0 0
    %410 = vmatpush1.bf16.msra.mxu0 %v375
    %411 = vmatprep.subr.bf16.mxu0 0
    %412 = vmatpush1.bf16.msra.mxu0 %v376
    %413 = vmatprep.subr.bf16.mxu0 0
    %414 = vmatpush1.bf16.msra.mxu0 %v377
    %415 = vmatprep.subr.bf16.mxu0 0
    %416 = vmatpush1.bf16.msra.mxu0 %v378
    %417 = vmatprep.subr.bf16.mxu0 0
    %418 = vmatpush1.bf16.msra.mxu0 %v379
    %419 = vmatprep.subr.bf16.mxu0 0
    %420 = vmatpush1.bf16.msra.mxu0 %v380
    %421 = vmatprep.subr.bf16.mxu0 0
    %422 = vmatpush1.bf16.msra.mxu0 %v381
    %423 = vmatprep.subr.bf16.mxu0 0
    %424 = vmatpush1.bf16.msra.mxu0 %v382
    %425 = vmatprep.subr.bf16.mxu0 0
    %426 = vmatpush1.bf16.msra.mxu0 %v383
    %427 = vmatprep.subr.bf16.mxu0 0
    %428 = vmatpush1.bf16.msra.mxu0 %v384
    %429 = vmatprep.subr.bf16.mxu0 0
    %430 = vmatpush1.bf16.msra.mxu0 %v385
    %431 = vmatprep.subr.bf16.mxu0 0
    %432 = vmatpush1.bf16.msra.mxu0 %v386
    %433 = vmatprep.subr.bf16.mxu0 0
    %434 = vmatpush1.bf16.msra.mxu0 %v387
    %435 = vmatprep.subr.bf16.mxu0 0
    %436 = vmatpush1.bf16.msra.mxu0 %v388
    %437 = vmatprep.mubr.bf16.mxu0 %v269
    %438 = vmatmul.mubr.bf16.gmra.mrb[0].mxu0 %v268
    %v439 = vpop.f32.mrb[0].mxu0
    %v440 = vadd.f32 %v307, %v439
    %v441 = vpop.f32.mrb[0].mxu0
    %v442 = vpop.f32.mrb[0].mxu0
    %v443 = vadd.f32 %v307, %v442
    %v444 = vpop.f32.mrb[0].mxu0
    %445 = vdwg.mxu0
    %v446 = vadd.f32 %v440, %v69
    %v447 = vadd.f32 %v443, %v70
    %448 = vst [vmem:[#allocation8] sm:$0xff] %v446
    %449 = vst [vmem:[#allocation8 + $0x8] sm:$0xff] %v447
    // Predicated region
    $region42: #{tpu_custom_call.1} parent=1 // pred_check
      _
    $region43: #{tpu_custom_call.1} parent=1 // pred_check_branch
      %451 = sbr.rel (0) target = $region45
    $region44: #{tpu_custom_call.1} parent=1 // pred_region
      %s453 = ssub.s32 256, 256
      %454 = vsyncadd [#allocation4], %s453
      %s455 = sshll.u32 [#allocation8], 4
      %s456 = int_to_ptr.vmem [resolvable:$true] %s455
      %461 = dma.vmem_to_hbm [thread:$0]  %s456, 256, %s7, [#allocation4], 128, 128, 8
    $region45: #{tpu_custom_call.1} parent=1 // pred_fallthru
      _
    // Predicated region
    $region46: #{tpu_custom_call.1} parent=1 // pred_check
      _
    $region47: #{tpu_custom_call.1} parent=1 // pred_check_branch
      %463 = sbr.rel (0) target = $region49
    $region48: #{tpu_custom_call.1} parent=1 // pred_region
      %464 = dma.done [#allocation4], 256
    $region49: #{tpu_custom_call.1} parent=1 // pred_fallthru
      _
    %465 = vsyncpa [#allocation3], 1
    %466 = vsyncpa [#allocation6], 1
    %467 = vsyncpa [#allocation4], 1

// kernel: tpu_custom_call.1
$region0: #{tpu_custom_call.1}
  #allocation0 [shape = 'u32[]', space=smem, size = 0x4, offset = 0x4, fixed_abs, tag = 'smem constant byte address 0x4 - core index']
  #allocation1 [shape = 'u32[144,128]{1,0:T(1,128)}', space=vmem, size = 0x12000, scoped, tag = 'internal scratch']
  %s0 = inlined_call_operand.hbm [shape: f32[16,128], index: 0, kind: input, shape index: {}]
  %s1 = inlined_call_operand.hbm [shape: bf16[128,256], index: 1, kind: input, shape index: {}]
  %s2 = inlined_call_operand.vmem [shape: f32[1,256], index: 2, kind: input, shape index: {}]
  %s3 = inlined_call_operand.hbm [shape: bf16[256,128], index: 3, kind: input, shape index: {}]
  %s4 = inlined_call_operand.vmem [shape: f32[1,128], index: 4, kind: input, shape index: {}]
  %s5 = inlined_call_operand.vmem [shape: f32[1,128], index: 5, kind: input, shape index: {}]
  %s6 = inlined_call_operand.vmem [shape: f32[1,128], index: 6, kind: input, shape index: {}]
  %s7 = inlined_call_operand.hbm [shape: f32[16,128], index: 7, kind: output, shape index: {}]
  %s8 = sld [smem:[#allocation0]]
  $region50: #{tpu_custom_call.1} parent=0
    _
  %s10 = ssub.s32 1, %s8
  %s11 = scalar_select 0, %s10, %s8
  $region1: #{tpu_custom_call.1} parent=0
    #allocation2 [shape = 'u8[8192]{0}', space=vmem, size = 0x2000, scoped, tag = 'input window, operand 0, single buffered']
    #allocation3 [shape = 's32[1]{0}', space=sflag, size = 0x4, scoped, tag = 'scoped memory for tpu_custom_call.1']
    #allocation4 [shape = 's32[1]{0}', space=sflag, size = 0x4, scoped, tag = 'scoped memory for tpu_custom_call.1']
    #allocation5 [shape = 'u8[65536]{0}', space=vmem, size = 0x10000, scoped, tag = 'input window, operand 1, single buffered']
    #allocation6 [shape = 's32[1]{0}', space=sflag, size = 0x4, scoped, tag = 'scoped memory for tpu_custom_call.1']
    #allocation7 [shape = 'u8[65536]{0}', space=vmem, size = 0x10000, scoped, tag = 'input window, operand 3, single buffered']
    #allocation8 [shape = 'u8[8192]{0}', space=vmem, size = 0x2000, scoped, tag = 'output window, operand 0, single buffered']
    %12 = vsyncpa [#allocation3], 0
    %13 = vsyncpa [#allocation6], 0
    %14 = vsyncpa [#allocation4], 0
    // Predicated region
    $region2: #{tpu_custom_call.1} parent=1 // pred_check
      _
    $region3: #{tpu_custom_call.1} parent=1 // pred_check_branch
      %16 = sbr.rel (0) target = $region5
    $region4: #{tpu_custom_call.1} parent=1 // pred_region
      %s18 = ssub.s32 256, 256
      %19 = vsyncadd [#allocation3], %s18
      %s20 = sshll.u32 [#allocation2], 4
      %s21 = int_to_ptr.vmem [resolvable:$true] %s20
      %26 = dma.hbm_to_vmem [thread:$0]  %s0, 256, %s21, [#allocation3], 128, 128, 8
    $region5: #{tpu_custom_call.1} parent=1 // pred_fallthru
      _
    // Predicated region
    $region6: #{tpu_custom_call.1} parent=1 // pred_check
      _
    $region7: #{tpu_custom_call.1} parent=1 // pred_check_branch
      %28 = sbr.rel (0) target = $region9
    $region8: #{tpu_custom_call.1} parent=1 // pred_region
      %s30 = ssub.s32 2048, 2048
      %31 = vsyncadd [#allocation6], %s30
      %s32 = sshll.u32 [#allocation5], 4
      %s33 = int_to_ptr.vmem [resolvable:$true] %s32
      %38 = dma.hbm_to_vmem [thread:$0]  %s1, 2048, %s33, [#allocation6], 128, 128, 8
    $region9: #{tpu_custom_call.1} parent=1 // pred_fallthru
      _
    // Predicated region
    $region10: #{tpu_custom_call.1} parent=1 // pred_check
      _
    $region11: #{tpu_custom_call.1} parent=1 // pred_check_branch
      %40 = sbr.rel (0) target = $region13
    $region12: #{tpu_custom_call.1} parent=1 // pred_region
      _
    $region13: #{tpu_custom_call.1} parent=1 // pred_fallthru
      _
    // Predicated region
    $region14: #{tpu_custom_call.1} parent=1 // pred_check
      _
    $region15: #{tpu_custom_call.1} parent=1 // pred_check_branch
      %42 = sbr.rel (0) target = $region17
    $region16: #{tpu_custom_call.1} parent=1 // pred_region
      %s44 = ssub.s32 2048, 2048
      %45 = vsyncadd [#allocation6], %s44
      %s46 = sshll.u32 [#allocation7], 4
      %s47 = int_to_ptr.vmem [resolvable:$true] %s46
      %52 = dma.hbm_to_vmem [thread:$0]  %s3, 2048, %s47, [#allocation6], 64, 64, 4
    $region17: #{tpu_custom_call.1} parent=1 // pred_fallthru
      _
    // Predicated region
    $region18: #{tpu_custom_call.1} parent=1 // pred_check
      _
    $region19: #{tpu_custom_call.1} parent=1 // pred_check_branch
      %54 = sbr.rel (0) target = $region21
    $region20: #{tpu_custom_call.1} parent=1 // pred_region
      _
    $region21: #{tpu_custom_call.1} parent=1 // pred_fallthru
      _
    // Predicated region
    $region22: #{tpu_custom_call.1} parent=1 // pred_check
      _
    $region23: #{tpu_custom_call.1} parent=1 // pred_check_branch
      %56 = sbr.rel (0) target = $region25
    $region24: #{tpu_custom_call.1} parent=1 // pred_region
      _
    $region25: #{tpu_custom_call.1} parent=1 // pred_fallthru
      _
    // Predicated region
    $region26: #{tpu_custom_call.1} parent=1 // pred_check
      _
    $region27: #{tpu_custom_call.1} parent=1 // pred_check_branch
      %58 = sbr.rel (0) target = $region29
    $region28: #{tpu_custom_call.1} parent=1 // pred_region
      _
    $region29: #{tpu_custom_call.1} parent=1 // pred_fallthru
      _
    // Predicated region
    $region30: #{tpu_custom_call.1} parent=1 // pred_check
      _
    $region31: #{tpu_custom_call.1} parent=1 // pred_check_branch
      %60 = sbr.rel (0) target = $region33
    $region32: #{tpu_custom_call.1} parent=1 // pred_region
      %61 = dma.done [#allocation3], 256
    $region33: #{tpu_custom_call.1} parent=1 // pred_fallthru
      _
    // Predicated region
    $region34: #{tpu_custom_call.1} parent=1 // pred_check
      _
    $region35: #{tpu_custom_call.1} parent=1 // pred_check_branch
      %63 = sbr.rel (0) target = $region37
    $region36: #{tpu_custom_call.1} parent=1 // pred_region
      %64 = dma.done [#allocation6], 2048
    $region37: #{tpu_custom_call.1} parent=1 // pred_fallthru
      _
    // Predicated region
    $region38: #{tpu_custom_call.1} parent=1 // pred_check
      _
    $region39: #{tpu_custom_call.1} parent=1 // pred_check_branch
      %66 = sbr.rel (0) target = $region41
    $region40: #{tpu_custom_call.1} parent=1 // pred_region
      %67 = dma.done [#allocation6], 2048
    $region41: #{tpu_custom_call.1} parent=1 // pred_fallthru
      _
    %v69 = vld [vmem:[#allocation2] sm:$0xff]
    %v70 = vld [vmem:[#allocation2 + $0x8] sm:$0xff]
    %71 = vadd.xlane.f32.xlu0 %v69
    %v72 = vpop.xlane.xlu0 %71
    %73 = vadd.xlane.f32.xlu0 %v70
    %v74 = vpop.xlane.xlu0 %73
    %v75 = vrcp.pop 128.0
    %v76 = vmul.f32 %v72, %v75
    %v77 = vmul.f32 %v74, %v75
    %v78 = vsub.f32 %v69, %v76
    %v79 = vsub.f32 %v70, %v77
    %v80 = vmul.f32 %v78, %v78
    %v81 = vmul.f32 %v79, %v79
    %82 = vadd.xlane.f32.xlu0 %v80
    %v83 = vpop.xlane.xlu0 %82
    %84 = vadd.xlane.f32.xlu0 %v81
    %v85 = vpop.xlane.xlu0 %84
    %v86 = vmul.f32 %v83, %v75
    %v87 = vmul.f32 %v85, %v75
    %v88 = vadd.f32 %v86, 1e-06
    %v89 = vadd.f32 %v87, 1e-06
    %v90 = vrsqrt.pop %v88
    %v91 = vrsqrt.pop %v89
    %v92 = vld [vmem:[%s5] sm:$0x1]
    %v94 = vlaneseq
    %v95 = vshrl.u32 %v94, 7
    %v96 = vsub.s32 0, %v95
    %v97 = vrot.slane %v92, %v96
    %v99 = vmul.f32 %v90, %v97
    %v100 = vmul.f32 %v91, %v97
    %v101 = vmul.f32 %v78, %v99
    %v102 = vmul.f32 %v79, %v100
    %v103 = vld [vmem:[%s6] sm:$0x1]
    %v105 = vlaneseq
    %v106 = vshrl.u32 %v105, 7
    %v107 = vsub.s32 0, %v106
    %v108 = vrot.slane %v103, %v107
    %v110 = vadd.f32 %v101, %v108
    %v111 = vadd.f32 %v102, %v108
    %v112 = vpack.c.bf16 %v111, %v110
    %v113 = vld [vmem:[#allocation5] sm:$0xff]
    %v114 = vld [vmem:[#allocation5 + $0x8] sm:$0xff]
    %v115 = vld [vmem:[#allocation5 + $0x10] sm:$0xff]
    %v116 = vld [vmem:[#allocation5 + $0x18] sm:$0xff]
    %v117 = vld [vmem:[#allocation5 + $0x20] sm:$0xff]
    %v118 = vld [vmem:[#allocation5 + $0x28] sm:$0xff]
    %v119 = vld [vmem:[#allocation5 + $0x30] sm:$0xff]
    %v120 = vld [vmem:[#allocation5 + $0x38] sm:$0xff]
    %v121 = vld [vmem:[#allocation5 + $0x40] sm:$0xff]
    %v122 = vld [vmem:[#allocation5 + $0x48] sm:$0xff]
    %v123 = vld [vmem:[#allocation5 + $0x50] sm:$0xff]
    %v124 = vld [vmem:[#allocation5 + $0x58] sm:$0xff]
    %v125 = vld [vmem:[#allocation5 + $0x60] sm:$0xff]
    %v126 = vld [vmem:[#allocation5 + $0x68] sm:$0xff]
    %v127 = vld [vmem:[#allocation5 + $0x70] sm:$0xff]
    %v128 = vld [vmem:[#allocation5 + $0x78] sm:$0xff]
    %v129 = vld [vmem:[%s2] sm:$0x3]
    %v131 = vlaneseq
    %v132 = vshrl.u32 %v131, 7
    %v133 = vsub.s32 0, %v132
    %v134 = vrot.slane %v129, %v133
    %v135 = vlaneseq
    %v136 = vshrl.u32 %v135, 7
    %v137 = vsub.s32 1, %v136
    %v138 = vrot.slane %v129, %v137
    %v157 = vunpack.c.l.b16 %v113
    %v158 = vunpack.c.h.b16 %v113
    %v159 = vunpack.c.l.b16 %v114
    %v160 = vunpack.c.h.b16 %v114
    %v161 = vunpack.c.l.b16 %v115
    %v162 = vunpack.c.h.b16 %v115
    %v163 = vunpack.c.l.b16 %v116
    %v164 = vunpack.c.h.b16 %v116
    %v165 = vunpack.c.l.b16 %v117
    %v166 = vunpack.c.h.b16 %v117
    %v167 = vunpack.c.l.b16 %v118
    %v168 = vunpack.c.h.b16 %v118
    %v169 = vunpack.c.l.b16 %v119
    %v170 = vunpack.c.h.b16 %v119
    %v171 = vunpack.c.l.b16 %v120
    %v172 = vunpack.c.h.b16 %v120
    %v173 = vunpack.c.l.b16 %v121
    %v174 = vunpack.c.h.b16 %v121
    %v175 = vunpack.c.l.b16 %v122
    %v176 = vunpack.c.h.b16 %v122
    %v177 = vunpack.c.l.b16 %v123
    %v178 = vunpack.c.h.b16 %v123
    %v179 = vunpack.c.l.b16 %v124
    %v180 = vunpack.c.h.b16 %v124
    %v181 = vunpack.c.l.b16 %v125
    %v182 = vunpack.c.h.b16 %v125
    %v183 = vunpack.c.l.b16 %v126
    %v184 = vunpack.c.h.b16 %v126
    %v185 = vunpack.c.l.b16 %v127
    %v186 = vunpack.c.h.b16 %v127
    %v187 = vunpack.c.l.b16 %v128
    %v188 = vunpack.c.h.b16 %v128
    %v189 = vpack.c.b16 %v159, %v157
    %v190 = vpack.c.b16 %v160, %v158
    %v191 = vpack.c.b16 %v163, %v161
    %v192 = vpack.c.b16 %v164, %v162
    %v193 = vpack.c.b16 %v167, %v165
    %v194 = vpack.c.b16 %v168, %v166
    %v195 = vpack.c.b16 %v171, %v169
    %v196 = vpack.c.b16 %v172, %v170
    %v197 = vpack.c.b16 %v175, %v173
    %v198 = vpack.c.b16 %v176, %v174
    %v199 = vpack.c.b16 %v179, %v177
    %v200 = vpack.c.b16 %v180, %v178
    %v201 = vpack.c.b16 %v183, %v181
    %v202 = vpack.c.b16 %v184, %v182
    %v203 = vpack.c.b16 %v187, %v185
    %v204 = vpack.c.b16 %v188, %v186
    %221 = vmatprep.subr.bf16.mxu0 %v190
    %222 = vmatpush1.bf16.msra.mxu0 %v189
    %223 = vmatprep.subr.bf16.mxu0 %v192
    %224 = vmatpush1.bf16.msra.mxu0 %v191
    %225 = vmatprep.subr.bf16.mxu0 %v194
    %226 = vmatpush1.bf16.msra.mxu0 %v193
    %227 = vmatprep.subr.bf16.mxu0 %v196
    %228 = vmatpush1.bf16.msra.mxu0 %v195
    %229 = vmatprep.subr.bf16.mxu0 %v198
    %230 = vmatpush1.bf16.msra.mxu0 %v197
    %231 = vmatprep.subr.bf16.mxu0 %v200
    %232 = vmatpush1.bf16.msra.mxu0 %v199
    %233 = vmatprep.subr.bf16.mxu0 %v202
    %234 = vmatpush1.bf16.msra.mxu0 %v201
    %235 = vmatprep.subr.bf16.mxu0 %v204
    %236 = vmatpush1.bf16.msra.mxu0 %v203
    %237 = vmatprep.subr.bf16.mxu0 0
    %238 = vmatpush1.bf16.msra.mxu0 0
    %239 = vmatprep.subr.bf16.mxu0 0
    %240 = vmatpush1.bf16.msra.mxu0 0
    %241 = vmatprep.subr.bf16.mxu0 0
    %242 = vmatpush1.bf16.msra.mxu0 0
    %243 = vmatprep.subr.bf16.mxu0 0
    %244 = vmatpush1.bf16.msra.mxu0 0
    %245 = vmatprep.subr.bf16.mxu0 0
    %246 = vmatpush1.bf16.msra.mxu0 0
    %247 = vmatprep.subr.bf16.mxu0 0
    %248 = vmatpush1.bf16.msra.mxu0 0
    %249 = vmatprep.subr.bf16.mxu0 0
    %250 = vmatpush1.bf16.msra.mxu0 0
    %251 = vmatprep.subr.bf16.mxu0 0
    %252 = vmatpush1.bf16.msra.mxu0 0
    %253 = vmatprep.mubr.bf16.mxu0 0
    %254 = vmatmul.mubr.bf16.gmra.mrb[0].mxu0 %v112
    %v255 = vpop.f32.mrb[0].mxu0
    %v256 = vadd.f32 %v134, %v255
    %v257 = vpop.f32.mrb[0].mxu0
    %v258 = vadd.f32 %v138, %v257
    %v259 = vpop.f32.mrb[0].mxu0
    %v260 = vadd.f32 %v134, %v259
    %v261 = vpop.f32.mrb[0].mxu0
    %v262 = vadd.f32 %v138, %v261
    %263 = vdwg.mxu0
    %v264 = vmax.f32 %v256, 0.0
    %v265 = vmax.f32 %v258, 0.0
    %v266 = vmax.f32 %v260, 0.0
    %v267 = vmax.f32 %v262, 0.0
    %v268 = vpack.c.bf16 %v266, %v264
    %v269 = vpack.c.bf16 %v267, %v265
    %v270 = vld [vmem:[#allocation7] sm:$0xf]
    %v271 = vld [vmem:[#allocation7 + $0x4] sm:$0xf]
    %v272 = vld [vmem:[#allocation7 + $0x8] sm:$0xf]
    %v273 = vld [vmem:[#allocation7 + $0xc] sm:$0xf]
    %v274 = vld [vmem:[#allocation7 + $0x10] sm:$0xf]
    %v275 = vld [vmem:[#allocation7 + $0x14] sm:$0xf]
    %v276 = vld [vmem:[#allocation7 + $0x18] sm:$0xf]
    %v277 = vld [vmem:[#allocation7 + $0x1c] sm:$0xf]
    %v278 = vld [vmem:[#allocation7 + $0x20] sm:$0xf]
    %v279 = vld [vmem:[#allocation7 + $0x24] sm:$0xf]
    %v280 = vld [vmem:[#allocation7 + $0x28] sm:$0xf]
    %v281 = vld [vmem:[#allocation7 + $0x2c] sm:$0xf]
    %v282 = vld [vmem:[#allocation7 + $0x30] sm:$0xf]
    %v283 = vld [vmem:[#allocation7 + $0x34] sm:$0xf]
    %v284 = vld [vmem:[#allocation7 + $0x38] sm:$0xf]
    %v285 = vld [vmem:[#allocation7 + $0x3c] sm:$0xf]
    %v286 = vld [vmem:[#allocation7 + $0x40] sm:$0xf]
    %v287 = vld [vmem:[#allocation7 + $0x44] sm:$0xf]
    %v288 = vld [vmem:[#allocation7 + $0x48] sm:$0xf]
    %v289 = vld [vmem:[#allocation7 + $0x4c] sm:$0xf]
    %v290 = vld [vmem:[#allocation7 + $0x50] sm:$0xf]
    %v291 = vld [vmem:[#allocation7 + $0x54] sm:$0xf]
    %v292 = vld [vmem:[#allocation7 + $0x58] sm:$0xf]
    %v293 = vld [vmem:[#allocation7 + $0x5c] sm:$0xf]
    %v294 = vld [vmem:[#allocation7 + $0x60] sm:$0xf]
    %v295 = vld [vmem:[#allocation7 + $0x64] sm:$0xf]
    %v296 = vld [vmem:[#allocation7 + $0x68] sm:$0xf]
    %v297 = vld [vmem:[#allocation7 + $0x6c] sm:$0xf]
    %v298 = vld [vmem:[#allocation7 + $0x70] sm:$0xf]
    %v299 = vld [vmem:[#allocation7 + $0x74] sm:$0xf]
    %v300 = vld [vmem:[#allocation7 + $0x78] sm:$0xf]
    %v301 = vld [vmem:[#allocation7 + $0x7c] sm:$0xf]
    %v302 = vld [vmem:[%s4] sm:$0x1]
    %v304 = vlaneseq
    %v305 = vshrl.u32 %v304, 7
    %v306 = vsub.s32 0, %v305
    %v307 = vrot.slane %v302, %v306
    %v341 = vunpack.c.l.b16 %v270
    %v342 = vunpack.c.l.b16 %v271
    %v343 = vunpack.c.l.b16 %v272
    %v344 = vunpack.c.l.b16 %v273
    %v345 = vunpack.c.l.b16 %v274
    %v346 = vunpack.c.l.b16 %v275
    %v347 = vunpack.c.l.b16 %v276
    %v348 = vunpack.c.l.b16 %v277
    %v349 = vunpack.c.l.b16 %v278
    %v350 = vunpack.c.l.b16 %v279
    %v351 = vunpack.c.l.b16 %v280
    %v352 = vunpack.c.l.b16 %v281
    %v353 = vunpack.c.l.b16 %v282
    %v354 = vunpack.c.l.b16 %v283
    %v355 = vunpack.c.l.b16 %v284
    %v356 = vunpack.c.l.b16 %v285
    %v357 = vunpack.c.l.b16 %v286
    %v358 = vunpack.c.l.b16 %v287
    %v359 = vunpack.c.l.b16 %v288
    %v360 = vunpack.c.l.b16 %v289
    %v361 = vunpack.c.l.b16 %v290
    %v362 = vunpack.c.l.b16 %v291
    %v363 = vunpack.c.l.b16 %v292
    %v364 = vunpack.c.l.b16 %v293
    %v365 = vunpack.c.l.b16 %v294
    %v366 = vunpack.c.l.b16 %v295
    %v367 = vunpack.c.l.b16 %v296
    %v368 = vunpack.c.l.b16 %v297
    %v369 = vunpack.c.l.b16 %v298
    %v370 = vunpack.c.l.b16 %v299
    %v371 = vunpack.c.l.b16 %v300
    %v372 = vunpack.c.l.b16 %v301
    %v373 = vpack.c.b16 %v342, %v341
    %v374 = vpack.c.b16 %v344, %v343
    %v375 = vpack.c.b16 %v346, %v345
    %v376 = vpack.c.b16 %v348, %v347
    %v377 = vpack.c.b16 %v350, %v349
    %v378 = vpack.c.b16 %v352, %v351
    %v379 = vpack.c.b16 %v354, %v353
    %v380 = vpack.c.b16 %v356, %v355
    %v381 = vpack.c.b16 %v358, %v357
    %v382 = vpack.c.b16 %v360, %v359
    %v383 = vpack.c.b16 %v362, %v361
    %v384 = vpack.c.b16 %v364, %v363
    %v385 = vpack.c.b16 %v366, %v365
    %v386 = vpack.c.b16 %v368, %v367
    %v387 = vpack.c.b16 %v370, %v369
    %v388 = vpack.c.b16 %v372, %v371
    %405 = vmatprep.subr.bf16.mxu0 0
    %406 = vmatpush1.bf16.msra.mxu0 %v373
    %407 = vmatprep.subr.bf16.mxu0 0
    %408 = vmatpush1.bf16.msra.mxu0 %v374
    %409 = vmatprep.subr.bf16.mxu0 0
    %410 = vmatpush1.bf16.msra.mxu0 %v375
    %411 = vmatprep.subr.bf16.mxu0 0
    %412 = vmatpush1.bf16.msra.mxu0 %v376
    %413 = vmatprep.subr.bf16.mxu0 0
    %414 = vmatpush1.bf16.msra.mxu0 %v377
    %415 = vmatprep.subr.bf16.mxu0 0
    %416 = vmatpush1.bf16.msra.mxu0 %v378
    %417 = vmatprep.subr.bf16.mxu0 0
    %418 = vmatpush1.bf16.msra.mxu0 %v379
    %419 = vmatprep.subr.bf16.mxu0 0
    %420 = vmatpush1.bf16.msra.mxu0 %v380
    %421 = vmatprep.subr.bf16.mxu0 0
    %422 = vmatpush1.bf16.msra.mxu0 %v381
    %423 = vmatprep.subr.bf16.mxu0 0
    %424 = vmatpush1.bf16.msra.mxu0 %v382
    %425 = vmatprep.subr.bf16.mxu0 0
    %426 = vmatpush1.bf16.msra.mxu0 %v383
    %427 = vmatprep.subr.bf16.mxu0 0
    %428 = vmatpush1.bf16.msra.mxu0 %v384
    %429 = vmatprep.subr.bf16.mxu0 0
    %430 = vmatpush1.bf16.msra.mxu0 %v385
    %431 = vmatprep.subr.bf16.mxu0 0
    %432 = vmatpush1.bf16.msra.mxu0 %v386
    %433 = vmatprep.subr.bf16.mxu0 0
    %434 = vmatpush1.bf16.msra.mxu0 %v387
    %435 = vmatprep.subr.bf16.mxu0 0
    %436 = vmatpush1.bf16.msra.mxu0 %v388
    %437 = vmatprep.mubr.bf16.mxu0 %v269
    %438 = vmatmul.mubr.bf16.gmra.mrb[0].mxu0 %v268
    %v439 = vpop.f32.mrb[0].mxu0
    %v440 = vadd.f32 %v307, %v439
    %v441 = vpop.f32.mrb[0].mxu0
    %v442 = vpop.f32.mrb[0].mxu0
    %v443 = vadd.f32 %v307, %v442
    %v444 = vpop.f32.mrb[0].mxu0
    %445 = vdwg.mxu0
    %v446 = vadd.f32 %v440, %v69
    %v447 = vadd.f32 %v443, %v70
    %448 = vst [vmem:[#allocation8] sm:$0xff] %v446
    %449 = vst [vmem:[#allocation8 + $0x8] sm:$0xff] %v447
    // Predicated region
    $region42: #{tpu_custom_call.1} parent=1 // pred_check
      _
    $region43: #{tpu_custom_call.1} parent=1 // pred_check_branch
      %451 = sbr.rel (0) target = $region45
    $region44: #{tpu_custom_call.1} parent=1 // pred_region
      %s453 = ssub.s32 256, 256
      %454 = vsyncadd [#allocation4], %s453
      %s455 = sshll.u32 [#allocation8], 4
      %s456 = int_to_ptr.vmem [resolvable:$true] %s455
      %461 = dma.vmem_to_hbm [thread:$0]  %s456, 256, %s7, [#allocation4], 128, 128, 8
    $region45: #{tpu_custom_call.1} parent=1 // pred_fallthru
      _
    // Predicated region
    $region46: #{tpu_custom_call.1} parent=1 // pred_check
      _
    $region47: #{tpu_custom_call.1} parent=1 // pred_check_branch
      %463 = sbr.rel (0) target = $region49
    $region48: #{tpu_custom_call.1} parent=1 // pred_region
      %464 = dma.done [#allocation4], 256
    $region49: #{tpu_custom_call.1} parent=1 // pred_fallthru
      _
    %465 = vsyncpa [#allocation3], 1
    %466 = vsyncpa [#allocation6], 1
    %467 = vsyncpa [#allocation4], 1

</llo_original>
